<compile_context>
chip_gen: v6e
topology: v6e:2x2x1
jax: 0.10.0
libtpu: 0.0.40
codegen_flags: <defaults>
</compile_context>

<pallas_src>
import functools

import jax
import jax.numpy as jnp
from jax.experimental import pallas as pl
from jax.experimental.pallas import tpu as pltpu


def _round_up(x, m):
    return (x + m - 1) // m * m


def _cdiv(a, b):
    return (a + b - 1) // b


def _pick_tm(n_frames, align):
    """Row-tile size: minimize padded-row waste; multiple of `align`."""
    cands = [256, 512, 1024]
    if n_frames <= 1024:
        cands.append(_round_up(max(n_frames, 16), 16))
    best_tm, best_waste = None, None
    for cand in cands:
        tm = _round_up(cand, align)
        waste = _cdiv(n_frames, tm) * tm - n_frames
        if best_waste is None or waste < best_waste or (
                waste == best_waste and tm > best_tm):
            best_tm, best_waste = tm, waste
    return best_tm


# ----------------------------------------------------------------------------
# Kernels
# ----------------------------------------------------------------------------
def _proj_energy_kernel(main_ref, tail_ref, w_ref, b_ref, mask_ref, out_ref, *,
                        n_chunks, hop, window, fp):
    """Fused in-kernel framing + projection (MXU) + RMS energy.

    main_ref: (TM, hop)    bf16  chunk rows [t*TM, t*TM+TM)
    tail_ref: (TAIL, hop)  bf16  chunk rows [t*TM+TM, t*TM+TM+TAIL)  (overlap)
    w_ref:    (W, Fp)      bf16  fused weights (padded cols are zero)
    b_ref:    (1, Fp)      f32   fused bias    (padded cols are zero)
    mask_ref: (1, Fp)      f32   one-hot at the reserved RMS lane
    out_ref:  (TM, Fp)     bf16
    """
    tm = main_ref.shape[0]
    full = jnp.concatenate([main_ref[...], tail_ref[...]], axis=0)  # (TM+TAIL, hop)
    w_all = w_ref[...]                                              # (W, Fp) bf16

    acc = jnp.zeros((tm, fp), jnp.float32)
    ssq = jnp.zeros((tm, 1), jnp.float32)
    for j in range(n_chunks):
        xj = full[j:j + tm, :]                                      # (TM, hop) bf16
        acc = acc + jnp.dot(xj, w_all[j * hop:(j + 1) * hop, :],
                            preferred_element_type=jnp.float32)
        xf = xj.astype(jnp.float32)
        ssq = ssq + jnp.sum(xf * xf, axis=-1, keepdims=True)

    proj = acc + b_ref[...]
    rms = jnp.sqrt(ssq * (1.0 / window) + 1e-8)
    # padded weight/bias columns are zero at the mask lane -> pure splice.
    out_ref[...] = (proj + rms * mask_ref[...]).astype(out_ref.dtype)


def _energy_kernel(main_ref, tail_ref, out_ref, *, n_chunks, window):
    """Energy-only variant: no MXU path, no weight DMA."""
    tm = main_ref.shape[0]
    full = jnp.concatenate([main_ref[...], tail_ref[...]], axis=0)
    ssq = jnp.zeros((tm, 1), jnp.float32)
    for j in range(n_chunks):
        xf = full[j:j + tm, :].astype(jnp.float32)
        ssq = ssq + jnp.sum(xf * xf, axis=-1, keepdims=True)
    rms = jnp.sqrt(ssq * (1.0 / window) + 1e-8)
    out_ref[...] = jnp.broadcast_to(rms, out_ref.shape)


# ----------------------------------------------------------------------------
# jitted group forward: pad/reshape/cast + ONE pallas_call + slicing
# ----------------------------------------------------------------------------
@functools.partial(
    jax.jit,
    static_argnames=("window", "hop", "center", "feat_dims", "has_energy"))
def _group_forward(audio, w_cat, b_cat, *, window, hop, center, feat_dims,
                   has_energy):
    B, T = audio.shape
    assert window % hop == 0, "in-kernel framing requires window % hop == 0"
    n_chunks = window // hop
    pad = window // 2 if center else 0
    n_frames = (T + 2 * pad - window) // hop + 1
    assert n_frames > 0, "audio too short for one frame"

    # Tail block (overlap across a row-tile boundary); multiple of 16 for bf16.
    tail_rows = _round_up(max(n_chunks - 1, 1), 16)
    tm = _pick_tm(n_frames, tail_rows)
    tiles = _cdiv(n_frames, tm)
    # v7x: make sure both TensorCores get work under "parallel" semantics.
    if B * tiles < 2 and n_frames >= 2 * tail_rows:
        tm = _round_up(_cdiv(n_frames, 2), tail_rows)
        tiles = _cdiv(n_frames, tm)
    r_slab = tiles * tm
    rows = r_slab + tail_rows                      # chunk rows per batch
    total = rows * hop
    right = total - pad - T
    if right >= 0:
        x = jnp.pad(audio, ((0, 0), (pad, right)))
    else:
        x = jnp.pad(audio, ((0, 0), (pad, 0)))[:, :total]
    chunks = x.reshape(B, rows, hop).astype(jnp.bfloat16)   # single bf16 pass

    grid = (B, tiles)
    main_spec = pl.BlockSpec((None, tm, hop), lambda b, i: (b, i, 0))
    tail_spec = pl.BlockSpec((None, tail_rows, hop),
                             lambda b, i: (b, (i + 1) * (tm // tail_rows), 0))
    semantics = ("parallel", "parallel")

    f_total = sum(feat_dims)
    if f_total > 0:
        fp = _round_up(f_total + 1, 128)           # +1 lane reserved for RMS
        assert f_total < fp
        # Padded columns (>= f_total) of w/b are zero by construction -> the
        # one-hot RMS splice at lane f_total is exact.
        w_f = (jnp.zeros((window, fp), jnp.float32)
               .at[:, :f_total].set(w_cat).astype(jnp.bfloat16))
        b_f = jnp.zeros((1, fp), jnp.float32).at[:, :f_total].set(b_cat)
        mask = jnp.zeros((1, fp), jnp.float32).at[0, f_total].set(1.0)

        vmem_est = (2 * tm * hop * 2                # main chunk tiles (2 bufs)
                    + 2 * tail_rows * hop * 2       # tail tiles       (2 bufs)
                    + 2 * window * fp * 2           # resident weight  (2 bufs)
                    + 4 * fp * 4                    # bias + mask
                    + 2 * tm * fp * 2               # output tiles     (2 bufs)
                    + tm * fp * 4)                  # f32 accumulator value
        vmem_limit = int(min(48 * 1024 * 1024,
                             max(16 * 1024 * 1024, 2 * vmem_est)))
        cost = pl.CostEstimate(
            flops=2 * B * r_slab * window * fp + 3 * B * r_slab * window,
            transcendentals=B * r_slab,
            bytes_accessed=(B * rows * hop * 2 + window * fp * 2
                            + B * r_slab * fp * 2))

        slab = pl.pallas_call(
            functools.partial(_proj_energy_kernel, n_chunks=n_chunks, hop=hop,
                              window=window, fp=fp),
            out_shape=jax.ShapeDtypeStruct((B, r_slab, fp), jnp.bfloat16),
            grid=grid,
            in_specs=[
                main_spec,
                tail_spec,
                pl.BlockSpec((window, fp), lambda b, i: (0, 0)),  # resident w
                pl.BlockSpec((1, fp), lambda b, i: (0, 0)),       # resident b
                pl.BlockSpec((1, fp), lambda b, i: (0, 0)),       # rms mask
            ],
            out_specs=pl.BlockSpec((None, tm, fp), lambda b, i: (b, i, 0)),
            compiler_params=pltpu.CompilerParams(
                dimension_semantics=semantics, vmem_limit_bytes=vmem_limit),
            cost_estimate=cost,
        )(chunks, chunks, w_f, b_f, mask)           # same array passed twice: no copy

        outs, off = [], 0
        for fd in feat_dims:
            outs.append(slab[:, :n_frames, off:off + fd].astype(jnp.float32))
            off += fd
        energy = (slab[:, :n_frames, f_total:f_total + 1].astype(jnp.float32)
                  if has_energy else None)
        return tuple(outs), energy

    # ---- energy-only group: RMS kernel, no weight/bias/mask inputs ----
    e = pl.pallas_call(
        functools.partial(_energy_kernel, n_chunks=n_chunks, window=window),
        out_shape=jax.ShapeDtypeStruct((B, r_slab, 8), jnp.float32),
        grid=grid,
        in_specs=[main_spec, tail_spec],
        out_specs=pl.BlockSpec((None, tm, 8), lambda b, i: (b, i, 0)),
        compiler_params=pltpu.CompilerParams(
            dimension_semantics=semantics,
            vmem_limit_bytes=int(max(16 * 1024 * 1024,
                                     4 * (tm * hop * 2 + tm * 8 * 4)))),
        cost_estimate=pl.CostEstimate(
            flops=3 * B * r_slab * window, transcendentals=B * r_slab,
            bytes_accessed=B * rows * hop * 2 + B * r_slab * 8 * 4),
    )(chunks, chunks)
    return (), e[:, :n_frames, :1]


# ----------------------------------------------------------------------------
# JAX-side port of Feature / FeatureProcessor
# ----------------------------------------------------------------------------
class PallasFeature:
    """Concrete Feature (the PyTorch Feature.compute_feature is abstract):

    kind == "proj":   per-frame linear projection  frames @ W + b
    kind == "energy": per-frame RMS  sqrt(mean(x^2) + 1e-8)
    Non-streaming, center-pad path only.
    """

    def __init__(self, sample_rate, window_size, frame_rate, feat_dim, kind,
                 center=True, param_key=0):
        assert kind in ("proj", "energy")
        self.sample_rate = sample_rate
        self.window_size = window_size
        self.frame_rate = frame_rate
        self.hop_size = sample_rate // frame_rate
        self.center = center
        self.kind = kind
        if kind == "proj":
            self.feat_dim = feat_dim
            kw, kb = jax.random.split(jax.random.PRNGKey(param_key))
            self.w = (jax.random.normal(kw, (window_size, feat_dim), jnp.float32)
                      / jnp.sqrt(jnp.float32(window_size)))
            self.b = 0.01 * jax.random.normal(kb, (1, feat_dim), jnp.float32)
        else:
            self.feat_dim = 1
            self.w = None
            self.b = None

    def __call__(self, audio):
        return _compute_group(audio, {"_self": self})["_self"]


def _compute_group(audio, feats):
    """One fused, jitted kernel run for features sharing (sr, window, hop, center)."""
    f0 = next(iter(feats.values()))
    input_ndim = audio.ndim
    if input_ndim == 1:
        audio = audio[None, :]

    proj_items = [(n, f) for n, f in feats.items() if f.kind == "proj"]
    energy_names = [n for n, f in feats.items() if f.kind == "energy"]
    feat_dims = tuple(f.feat_dim for _, f in proj_items)

    if proj_items:
        w_cat = jnp.concatenate([f.w for _, f in proj_items], axis=1)
        b_cat = jnp.concatenate([f.b for _, f in proj_items], axis=1)
    else:
        w_cat, b_cat = None, None

    proj_outs, energy = _group_forward(
        audio, w_cat, b_cat,
        window=f0.window_size, hop=f0.hop_size, center=f0.center,
        feat_dims=feat_dims, has_energy=bool(energy_names))

    out = {}
    for (name, _), arr in zip(proj_items, proj_outs):
        out[name] = arr[0] if input_ndim == 1 else arr
    for name in energy_names:
        out[name] = energy[0] if input_ndim == 1 else energy
    return out


class PallasFeatureProcessor:
    def __init__(self, features):
        self.features = dict(features)
        fpss = [f.frame_rate for f in self.features.values()]
        assert all(x == fpss[0] for x in fpss)

    def __call__(self, audio, sample_rate):
        inputs = {sample_rate: audio}
        groups = {}
        for name, feat in self.features.items():
            if feat.sample_rate not in inputs:
                # TODO(synk): torchaudio polyphase resampling not ported.
                raise NotImplementedError("resample path not ported")
            key = (feat.sample_rate, feat.window_size, feat.hop_size, feat.center)
            groups.setdefault(key, {})[name] = feat
        feature_data = {}
        for key, group_feats in groups.items():
            feature_data.update(_compute_group(inputs[key[0]], group_feats))
        return {name: feature_data[name] for name in self.features}


# ----------------------------------------------------------------------------
if __name__ == "__main__":
    # small, kernel-friendly shapes: sr=1024, frame_rate=16 -> hop=64, window=128
    SR, FRAME_RATE, WINDOW, FEAT_DIM = 1024, 16, 128, 32
    HOP = SR // FRAME_RATE
    B, T = 2, 448   # with center padding: n_frames = (448+128-128)//64 + 1 = 8
    N_FRAMES = (T + 2 * (WINDOW // 2) - WINDOW) // HOP + 1

    key = jax.random.PRNGKey(0)
    audio = jax.random.normal(key, (B, T), jnp.float32)

    processor = PallasFeatureProcessor({
        "proj":   PallasFeature(SR, WINDOW, FRAME_RATE, FEAT_DIM, "proj",   param_key=1),
        "energy": PallasFeature(SR, WINDOW, FRAME_RATE, FEAT_DIM, "energy", param_key=2),
    })

    out = processor(audio, SR)
    out = jax.block_until_ready(out)

    assert out["proj"].shape == (B, N_FRAMES, FEAT_DIM)
    assert out["energy"].shape == (B, N_FRAMES, 1)
    assert bool(jnp.all(jnp.isfinite(out["proj"])))
    assert bool(jnp.all(out["energy"] > 0))

    # pure-JAX f32 reference; generous tolerances account for the deliberate
    # bf16 streaming of chunks / weights / output slab.
    pad = WINDOW // 2
    xref = jnp.pad(audio, ((0, 0), (pad, pad)))
    idx = jnp.arange(N_FRAMES)[:, None] * HOP + jnp.arange(WINDOW)[None, :]
    frames_ref = xref[:, idx]                                          # (B, N, W)
    proj_ref = (jnp.einsum("bnw,wf->bnf", frames_ref,
                           processor.features["proj"].w)
                + processor.features["proj"].b)
    energy_ref = jnp.sqrt(jnp.mean(frames_ref * frames_ref, axis=-1,
                                   keepdims=True) + 1e-8)
    assert bool(jnp.allclose(out["proj"], proj_ref, atol=8e-2, rtol=5e-2))
    assert bool(jnp.allclose(out["energy"], energy_ref, atol=2e-2, rtol=2e-2))

    print("KERNEL_OK")
</pallas_src>

<mosaic_0001>
module attributes {stable_mosaic.version = 11 : i64} {
  func.func @_proj_energy_kernel(%arg0: i32, %arg1: i32, %arg2: memref<1x16x64xbf16, #tpu.memory_space<vmem>>, %arg3: memref<1x16x64xbf16, #tpu.memory_space<vmem>>, %arg4: memref<128x128xbf16, #tpu.memory_space<vmem>>, %arg5: memref<1x128xf32, #tpu.memory_space<vmem>>, %arg6: memref<1x128xf32, #tpu.memory_space<vmem>>, %arg7: memref<1x16x128xbf16, #tpu.memory_space<vmem>>) attributes {dimension_semantics = [#tpu.dimension_semantics<parallel>, #tpu.dimension_semantics<parallel>], iteration_bounds = array<i64: 2, 1>, scalar_prefetch = 0 : i64, scratch_operands = 0 : i64, tpu.core_type = #tpu.core_type<tc>, window_params = [{transform_indices = @transform_0, window_bounds = array<i64: 1, 16, 64>}, {transform_indices = @transform_1, window_bounds = array<i64: 1, 16, 64>}, {pipeline_mode = #tpu.pipeline_mode<synchronous>, transform_indices = @transform_2, window_bounds = array<i64: 128, 128>}, {pipeline_mode = #tpu.pipeline_mode<synchronous>, transform_indices = @transform_3, window_bounds = array<i64: 1, 128>}, {pipeline_mode = #tpu.pipeline_mode<synchronous>, transform_indices = @transform_4, window_bounds = array<i64: 1, 128>}, {transform_indices = @transform_5, window_bounds = array<i64: 1, 16, 128>}]} {
    %c0 = arith.constant 0 : index
    %c0_0 = arith.constant 0 : index
    %c0_1 = arith.constant 0 : index
    %0 = vector.load %arg2[%c0, %c0_0, %c0_1] : memref<1x16x64xbf16, #tpu.memory_space<vmem>>, vector<1x16x64xbf16>
    %1 = vector.shape_cast %0 : vector<1x16x64xbf16> to vector<16x64xbf16>
    %c0_2 = arith.constant 0 : index
    %c0_3 = arith.constant 0 : index
    %c0_4 = arith.constant 0 : index
    %2 = vector.load %arg3[%c0_2, %c0_3, %c0_4] : memref<1x16x64xbf16, #tpu.memory_space<vmem>>, vector<1x16x64xbf16>
    %3 = vector.shape_cast %2 : vector<1x16x64xbf16> to vector<16x64xbf16>
    %4 = tpu.concatenate %1, %3 in 0 : vector<16x64xbf16>, vector<16x64xbf16> -> vector<32x64xbf16>
    %c0_5 = arith.constant 0 : index
    %c0_6 = arith.constant 0 : index
    %5 = vector.load %arg4[%c0_5, %c0_6] : memref<128x128xbf16, #tpu.memory_space<vmem>>, vector<128x128xbf16>
    %cst = arith.constant 0.000000e+00 : f32
    %6 = vector.broadcast %cst : f32 to vector<16x128xf32>
    %cst_7 = arith.constant 0.000000e+00 : f32
    %7 = vector.broadcast %cst_7 : f32 to vector<16x1xf32>
    %8 = vector.extract_strided_slice %4 {offsets = [0, 0], sizes = [16, 64], strides = [1, 1]} : vector<32x64xbf16> to vector<16x64xbf16>
    %9 = vector.extract_strided_slice %5 {offsets = [0, 0], sizes = [64, 128], strides = [1, 1]} : vector<128x128xbf16> to vector<64x128xbf16>
    %cst_8 = arith.constant dense<0.000000e+00> : vector<16x128xf32>
    %10 = tpu.matmul %8, %9, %cst_8 {dimension_numbers = #tpu.dot_dimension_numbers<[1], [0], [0], [1], [0, 0, 1, 1], [], []>} : vector<16x64xbf16>, vector<64x128xbf16>, vector<16x128xf32> -> vector<16x128xf32>
    %11 = arith.addf %6, %10 : vector<16x128xf32>
    %12 = arith.extf %8 : vector<16x64xbf16> to vector<16x64xf32>
    %13 = arith.mulf %12, %12 : vector<16x64xf32>
    %cst_9 = arith.constant dense<0.000000e+00> : vector<16xf32>
    %14 = vector.multi_reduction <add>, %13, %cst_9 [1] : vector<16x64xf32> to vector<16xf32>
    %15 = vector.shape_cast %14 : vector<16xf32> to vector<16x1xf32>
    %16 = arith.addf %7, %15 : vector<16x1xf32>
    %17 = vector.extract_strided_slice %4 {offsets = [1, 0], sizes = [16, 64], strides = [1, 1]} : vector<32x64xbf16> to vector<16x64xbf16>
    %18 = vector.extract_strided_slice %5 {offsets = [64, 0], sizes = [64, 128], strides = [1, 1]} : vector<128x128xbf16> to vector<64x128xbf16>
    %cst_10 = arith.constant dense<0.000000e+00> : vector<16x128xf32>
    %19 = tpu.matmul %17, %18, %cst_10 {dimension_numbers = #tpu.dot_dimension_numbers<[1], [0], [0], [1], [0, 0, 1, 1], [], []>} : vector<16x64xbf16>, vector<64x128xbf16>, vector<16x128xf32> -> vector<16x128xf32>
    %20 = arith.addf %11, %19 : vector<16x128xf32>
    %21 = arith.extf %17 : vector<16x64xbf16> to vector<16x64xf32>
    %22 = arith.mulf %21, %21 : vector<16x64xf32>
    %cst_11 = arith.constant dense<0.000000e+00> : vector<16xf32>
    %23 = vector.multi_reduction <add>, %22, %cst_11 [1] : vector<16x64xf32> to vector<16xf32>
    %24 = vector.shape_cast %23 : vector<16xf32> to vector<16x1xf32>
    %25 = arith.addf %16, %24 : vector<16x1xf32>
    %c0_12 = arith.constant 0 : index
    %c0_13 = arith.constant 0 : index
    %26 = vector.load %arg5[%c0_12, %c0_13] : memref<1x128xf32, #tpu.memory_space<vmem>>, vector<1x128xf32>
    %27 = vector.broadcast %26 : vector<1x128xf32> to vector<16x128xf32>
    %28 = arith.addf %20, %27 : vector<16x128xf32>
    %cst_14 = arith.constant 7.812500e-03 : f32
    %29 = vector.broadcast %cst_14 : f32 to vector<16x1xf32>
    %30 = arith.mulf %25, %29 : vector<16x1xf32>
    %cst_15 = arith.constant 9.99999993E-9 : f32
    %31 = vector.broadcast %cst_15 : f32 to vector<16x1xf32>
    %32 = arith.addf %30, %31 : vector<16x1xf32>
    %33 = math.sqrt %32 : vector<16x1xf32>
    %c0_16 = arith.constant 0 : index
    %c0_17 = arith.constant 0 : index
    %34 = vector.load %arg6[%c0_16, %c0_17] : memref<1x128xf32, #tpu.memory_space<vmem>>, vector<1x128xf32>
    %35 = vector.broadcast %33 : vector<16x1xf32> to vector<16x128xf32>
    %36 = vector.broadcast %34 : vector<1x128xf32> to vector<16x128xf32>
    %37 = arith.mulf %35, %36 : vector<16x128xf32>
    %38 = arith.addf %28, %37 : vector<16x128xf32>
    %39 = arith.truncf %38 : vector<16x128xf32> to vector<16x128xbf16>
    %c0_18 = arith.constant 0 : index
    %c0_19 = arith.constant 0 : index
    %c0_20 = arith.constant 0 : index
    %40 = vector.load %arg7[%c0_18, %c0_19, %c0_20] : memref<1x16x128xbf16, #tpu.memory_space<vmem>>, vector<1x16x128xbf16>
    %41 = vector.shape_cast %40 : vector<1x16x128xbf16> to vector<16x128xbf16>
    %42 = vector.shape_cast %39 : vector<16x128xbf16> to vector<1x16x128xbf16>
    tpu.vector_store %arg7[%c0_18, %c0_19, %c0_20], %42 {strides = array<i32>} : memref<1x16x128xbf16, #tpu.memory_space<vmem>>, vector<1x16x128xbf16>,
    return
  }
  func.func @transform_0(%arg0: i32, %arg1: i32) -> (i32, i32, i32) {
    %c0_i32 = arith.constant 0 : i32
    %c0_i32_0 = arith.constant 0 : i32
    return %arg0, %arg1, %c0_i32 : i32, i32, i32
  }
  func.func @transform_1(%arg0: i32, %arg1: i32) -> (i32, i32, i32) {
    %c1_i32 = arith.constant 1 : i32
    %0 = arith.addi %arg1, %c1_i32 : i32
    %c1_i32_0 = arith.constant 1 : i32
    %1 = arith.muli %0, %c1_i32_0 : i32
    %c0_i32 = arith.constant 0 : i32
    %c0_i32_1 = arith.constant 0 : i32
    return %arg0, %1, %c0_i32 : i32, i32, i32
  }
  func.func @transform_2(%arg0: i32, %arg1: i32) -> (i32, i32) {
    %c0_i32 = arith.constant 0 : i32
    %c0_i32_0 = arith.constant 0 : i32
    %c0_i32_1 = arith.constant 0 : i32
    return %c0_i32, %c0_i32_0 : i32, i32
  }
  func.func @transform_3(%arg0: i32, %arg1: i32) -> (i32, i32) {
    %c0_i32 = arith.constant 0 : i32
    %c0_i32_0 = arith.constant 0 : i32
    %c0_i32_1 = arith.constant 0 : i32
    return %c0_i32, %c0_i32_0 : i32, i32
  }
  func.func @transform_4(%arg0: i32, %arg1: i32) -> (i32, i32) {
    %c0_i32 = arith.constant 0 : i32
    %c0_i32_0 = arith.constant 0 : i32
    %c0_i32_1 = arith.constant 0 : i32
    return %c0_i32, %c0_i32_0 : i32, i32
  }
  func.func @transform_5(%arg0: i32, %arg1: i32) -> (i32, i32, i32) {
    %c0_i32 = arith.constant 0 : i32
    %c0_i32_0 = arith.constant 0 : i32
    return %arg0, %arg1, %c0_i32 : i32, i32, i32
  }
}

</mosaic_0001>

<llo_original>
// kernel: _group_forward.1
$region0: #{_group_forward.1}
  #allocation0 [shape = 'u32[]', space=smem, size = 0x4, offset = 0x4, fixed_abs, tag = 'smem constant byte address 0x4 - core index']
  #allocation1 [shape = 'u32[144,128]{1,0:T(1,128)}', space=vmem, size = 0x12000, scoped, tag = 'internal scratch']
  %s0 = inlined_call_operand.vmem [shape: bf16[2,32,64], index: 0, kind: input, shape index: {}, may-alias: {0,1}]
  %s1 = inlined_call_operand.vmem [shape: bf16[2,32,64], index: 1, kind: input, shape index: {}, may-alias: {0,1}]
  %s2 = inlined_call_operand.vmem [shape: bf16[128,128], index: 2, kind: input, shape index: {}]
  %s3 = inlined_call_operand.vmem [shape: f32[1,128], index: 3, kind: input, shape index: {}]
  %s4 = inlined_call_operand.vmem [shape: f32[1,128], index: 4, kind: input, shape index: {}]
  %s5 = inlined_call_operand.vmem [shape: bf16[2,16,128], index: 5, kind: output, shape index: {}]
  %s6 = sld [smem:[#allocation0]]
  $region53: #{_group_forward.1} parent=0
    _
  %s8 = ssub.s32 1, %s6
  %s9 = scalar_select 0, %s8, %s6
  loop: start=0, step=1, limit=4
  $region2: #{_group_forward.1} parent=0 // loop_pre_header
    _
  $region3: #{_group_forward.1} parent=0 // loop_header
    %s11 = sphi 0, %s15
    %p12 = scmp.ge.s32.totalorder %s11, 4
    %s18 = sphi 0, %s30
    %s19 = sphi 0, %s26
    %s20 = sphi 0, %s18
    %s21 = sphi 0, %s19
    %s22 = sphi 0, %s20
    %s23 = sphi 0, %s21
    %s35 = sphi 0, %s37
    %s38 = sphi 0, %s35
    %s39 = sphi 0, %s38
    %s55 = sphi 0, %s39
    %s65 = sphi 0, %s67
    %s68 = sphi 0, %s65
    %s69 = sphi 0, %s68
    %s85 = sphi 0, %s69
    %s89 = sphi 0, %s89
    %s91 = sphi 0, %s89
    %s92 = sphi 0, %s91
    %s106 = sphi 0, %s92
    %s110 = sphi 0, %s110
    %s112 = sphi 0, %s110
    %s113 = sphi 0, %s112
    %s127 = sphi 0, %s113
    %s131 = sphi 0, %s131
    %s133 = sphi 0, %s131
    %s134 = sphi 0, %s133
    %s148 = sphi 0, %s134
    %s156 = sphi 0, %s158
    %s159 = sphi 0, %s156
    %s160 = sphi 0, %s159
    %s176 = sphi 0, %s160
  $region4: #{_group_forward.1} parent=0 // loop_header_branch
    %14 = sbr.rel (%p12) target = $region8
  $region5: #{_group_forward.1} parent=0 // loop_body
    %s16 = ssub.s32 %s11, 1
    %s17 = ssub.s32 %s11, 2
    %s24 = sadd.s32 1, %s19
    %p25 = scmp.ge.s32.totalorder %s24, 1
    %s26 = scalar_select %p25, 0, %s24
    %s27 = sadd.s32 1, %s18
    %s28 = scalar_select %p25, %s27, %s18
    %p29 = scmp.ge.s32.totalorder %s28, 2
    %s30 = scalar_select %p29, 0, %s28
    %s31 = ssub.s32 %s18, %s30
    %s32 = ssub.s32 %s19, %s26
    %s33 = sor.u32 %s31, %s32
    %p34 = scmp.eq.s32.totalorder %s33, 0
    %s36 = sadd.s32 %s35, 1
    %s37 = scalar_select %p34, %s35, %s36
    %p40 = pneg %p34
    %p41 = scmp.eq.s32.totalorder %s11, 1
    %p42 = por %p40, %p41
    %p43 = scmp.ne.s32.totalorder %s35, %s38
    %p44 = scmp.eq.s32.totalorder %s11, 0
    %p45 = por %p43, %p44
    %p46 = scmp.ne.s32.totalorder %s35, %s38
    %p47 = scmp.eq.s32.totalorder %s16, 1
    %p48 = por %p46, %p47
    %p49 = scmp.ne.s32.totalorder %s38, %s39
    %p50 = scmp.eq.s32.totalorder %s16, 0
    %p51 = por %p49, %p50
    %p52 = scmp.ne.s32.totalorder %s38, %s39
    %p53 = scmp.eq.s32.totalorder %s17, 1
    %p54 = por %p52, %p53
    %p56 = scmp.ne.s32.totalorder %s39, %s55
    %p57 = scmp.eq.s32.totalorder %s17, 0
    %p58 = por %p56, %p57
    %s59 = sadd.s32 %s19, 1
    %s60 = sadd.s32 %s26, 1
    %s61 = ssub.s32 %s18, %s30
    %s62 = ssub.s32 %s59, %s60
    %s63 = sor.u32 %s61, %s62
    %p64 = scmp.eq.s32.totalorder %s63, 0
    %s66 = sadd.s32 %s65, 1
    %s67 = scalar_select %p64, %s65, %s66
    %p70 = pneg %p64
    %p71 = scmp.eq.s32.totalorder %s11, 1
    %p72 = por %p70, %p71
    %p73 = scmp.ne.s32.totalorder %s65, %s68
    %p74 = scmp.eq.s32.totalorder %s11, 0
    %p75 = por %p73, %p74
    %p76 = scmp.ne.s32.totalorder %s65, %s68
    %p77 = scmp.eq.s32.totalorder %s16, 1
    %p78 = por %p76, %p77
    %p79 = scmp.ne.s32.totalorder %s68, %s69
    %p80 = scmp.eq.s32.totalorder %s16, 0
    %p81 = por %p79, %p80
    %p82 = scmp.ne.s32.totalorder %s68, %s69
    %p83 = scmp.eq.s32.totalorder %s17, 1
    %p84 = por %p82, %p83
    %p86 = scmp.ne.s32.totalorder %s69, %s85
    %p87 = scmp.eq.s32.totalorder %s17, 0
    %p88 = por %p86, %p87
    %s90 = sadd.s32 %s89, 1
    %p93 = scmp.eq.s32.totalorder %s11, 1
    %p94 = scmp.ne.s32.totalorder %s89, %s91
    %p95 = scmp.eq.s32.totalorder %s11, 0
    %p96 = por %p94, %p95
    %p97 = scmp.ne.s32.totalorder %s89, %s91
    %p98 = scmp.eq.s32.totalorder %s16, 1
    %p99 = por %p97, %p98
    %p100 = scmp.ne.s32.totalorder %s91, %s92
    %p101 = scmp.eq.s32.totalorder %s16, 0
    %p102 = por %p100, %p101
    %p103 = scmp.ne.s32.totalorder %s91, %s92
    %p104 = scmp.eq.s32.totalorder %s17, 1
    %p105 = por %p103, %p104
    %p107 = scmp.ne.s32.totalorder %s92, %s106
    %p108 = scmp.eq.s32.totalorder %s17, 0
    %p109 = por %p107, %p108
    %s111 = sadd.s32 %s110, 1
    %p114 = scmp.eq.s32.totalorder %s11, 1
    %p115 = scmp.ne.s32.totalorder %s110, %s112
    %p116 = scmp.eq.s32.totalorder %s11, 0
    %p117 = por %p115, %p116
    %p118 = scmp.ne.s32.totalorder %s110, %s112
    %p119 = scmp.eq.s32.totalorder %s16, 1
    %p120 = por %p118, %p119
    %p121 = scmp.ne.s32.totalorder %s112, %s113
    %p122 = scmp.eq.s32.totalorder %s16, 0
    %p123 = por %p121, %p122
    %p124 = scmp.ne.s32.totalorder %s112, %s113
    %p125 = scmp.eq.s32.totalorder %s17, 1
    %p126 = por %p124, %p125
    %p128 = scmp.ne.s32.totalorder %s113, %s127
    %p129 = scmp.eq.s32.totalorder %s17, 0
    %p130 = por %p128, %p129
    %s132 = sadd.s32 %s131, 1
    %p135 = scmp.eq.s32.totalorder %s11, 1
    %p136 = scmp.ne.s32.totalorder %s131, %s133
    %p137 = scmp.eq.s32.totalorder %s11, 0
    %p138 = por %p136, %p137
    %p139 = scmp.ne.s32.totalorder %s131, %s133
    %p140 = scmp.eq.s32.totalorder %s16, 1
    %p141 = por %p139, %p140
    %p142 = scmp.ne.s32.totalorder %s133, %s134
    %p143 = scmp.eq.s32.totalorder %s16, 0
    %p144 = por %p142, %p143
    %p145 = scmp.ne.s32.totalorder %s133, %s134
    %p146 = scmp.eq.s32.totalorder %s17, 1
    %p147 = por %p145, %p146
    %p149 = scmp.ne.s32.totalorder %s134, %s148
    %p150 = scmp.eq.s32.totalorder %s17, 0
    %p151 = por %p149, %p150
    %s152 = ssub.s32 %s18, %s30
    %s153 = ssub.s32 %s19, %s26
    %s154 = sor.u32 %s152, %s153
    %p155 = scmp.eq.s32.totalorder %s154, 0
    %s157 = sadd.s32 %s156, 1
    %s158 = scalar_select %p155, %s156, %s157
    %p161 = pneg %p155
    %p162 = scmp.eq.s32.totalorder %s11, 1
    %p163 = por %p161, %p162
    %p164 = scmp.ne.s32.totalorder %s156, %s159
    %p165 = scmp.eq.s32.totalorder %s11, 0
    %p166 = por %p164, %p165
    %p167 = scmp.ne.s32.totalorder %s156, %s159
    %p168 = scmp.eq.s32.totalorder %s16, 1
    %p169 = por %p167, %p168
    %p170 = scmp.ne.s32.totalorder %s159, %s160
    %p171 = scmp.eq.s32.totalorder %s16, 0
    %p172 = por %p170, %p171
    %p173 = scmp.ne.s32.totalorder %s159, %s160
    %p174 = scmp.eq.s32.totalorder %s17, 1
    %p175 = por %p173, %p174
    %p177 = scmp.ne.s32.totalorder %s160, %s176
    %p178 = scmp.eq.s32.totalorder %s17, 0
    %p179 = por %p177, %p178
    %p180 = scmp.le.s32.totalorder 1, %s11
    %p181 = scmp.lt.s32.totalorder %s11, 3
    %p182 = pnand %p180, %p181
    %p183 = pneg %p182
    // Predicated region
    $region9: #{_group_forward.1} parent=5 // pred_check
      _
    $region10: #{_group_forward.1} parent=5 // pred_check_branch
      %185 = sbr.rel (%p182) target = $region12
    $region11: #{_group_forward.1} parent=5 // pred_region
      %s186 = ssub.s32 %s11, 1
      // Predicated region
      $region13: #{_group_forward.1} parent=11 // pred_check
        %p187 = pneg %p102
      $region14: #{_group_forward.1} parent=11 // pred_check_branch
        %189 = sbr.rel (%p187) target = $region16
      $region15: #{_group_forward.1} parent=11 // pred_region
        _
      $region16: #{_group_forward.1} parent=11 // pred_fallthru
        _
      // Predicated region
      $region17: #{_group_forward.1} parent=11 // pred_check
        %p190 = pneg %p123
      $region18: #{_group_forward.1} parent=11 // pred_check_branch
        %192 = sbr.rel (%p190) target = $region20
      $region19: #{_group_forward.1} parent=11 // pred_region
        _
      $region20: #{_group_forward.1} parent=11 // pred_fallthru
        _
      // Predicated region
      $region21: #{_group_forward.1} parent=11 // pred_check
        %p193 = pneg %p144
      $region22: #{_group_forward.1} parent=11 // pred_check_branch
        %195 = sbr.rel (%p193) target = $region24
      $region23: #{_group_forward.1} parent=11 // pred_region
        _
      $region24: #{_group_forward.1} parent=11 // pred_fallthru
        _
    $region12: #{_group_forward.1} parent=5 // pred_fallthru
      _
    %p196 = scmp.lt.s32.totalorder %s11, 2
    // Predicated region
    $region25: #{_group_forward.1} parent=5 // pred_check
      %p197 = pneg %p196
    $region26: #{_group_forward.1} parent=5 // pred_check_branch
      %199 = sbr.rel (%p197) target = $region28
    $region27: #{_group_forward.1} parent=5 // pred_region
      // Predicated region
      $region29: #{_group_forward.1} parent=27 // pred_check
        %p200 = pneg %p45
      $region30: #{_group_forward.1} parent=27 // pred_check_branch
        %202 = sbr.rel (%p200) target = $region32
      $region31: #{_group_forward.1} parent=27 // pred_region
        %s203 = smul.u32 2, %s19
        %p204 = scmp.lt.s32.totalorder %s18, 1
        %s205 = scalar_select %p204, %s18, 1
        %p206 = scmp.lt.s32.totalorder %s203, 3
        %s207 = scalar_select %p206, %s203, 3
        %s208 = smul.addr %s205, 4
        %s209 = sadd.s32 %s207, %s208
        %s210 = smul.addr %s209, 4
        %s211 = scalar_lea.vmem %s0, %s210
        %s212 = smul.u32 2, %s19
      $region32: #{_group_forward.1} parent=27 // pred_fallthru
        _
      // Predicated region
      $region33: #{_group_forward.1} parent=27 // pred_check
        %p213 = pneg %p75
      $region34: #{_group_forward.1} parent=27 // pred_check_branch
        %215 = sbr.rel (%p213) target = $region36
      $region35: #{_group_forward.1} parent=27 // pred_region
        %s216 = sadd.s32 %s19, 1
        %s217 = smul.u32 2, %s216
        %p218 = scmp.lt.s32.totalorder %s18, 1
        %s219 = scalar_select %p218, %s18, 1
        %p220 = scmp.lt.s32.totalorder %s217, 3
        %s221 = scalar_select %p220, %s217, 3
        %s222 = smul.addr %s219, 4
        %s223 = sadd.s32 %s221, %s222
        %s224 = smul.addr %s223, 4
        %s225 = scalar_lea.vmem %s1, %s224
        %s226 = sadd.s32 %s19, 1
        %s227 = smul.u32 2, %s226
      $region36: #{_group_forward.1} parent=27 // pred_fallthru
        _
    $region28: #{_group_forward.1} parent=5 // pred_fallthru
      _
    %p228 = scmp.le.s32.totalorder 1, %s11
    %p229 = scmp.lt.s32.totalorder %s11, 3
    %p230 = pnand %p228, %p229
    %p231 = pneg %p230
    // Predicated region
    $region37: #{_group_forward.1} parent=5 // pred_check
      _
    $region38: #{_group_forward.1} parent=5 // pred_check_branch
      %233 = sbr.rel (%p230) target = $region40
    $region39: #{_group_forward.1} parent=5 // pred_region
      %s234 = ssub.s32 %s11, 1
      %s235 = smul.u32 2, %s21
      %p236 = scmp.lt.s32.totalorder %s20, 1
      %s237 = scalar_select %p236, %s20, 1
      %p238 = scmp.lt.s32.totalorder %s235, 3
      %s239 = scalar_select %p238, %s235, 3
      %s240 = smul.addr %s237, 4
      %s241 = sadd.s32 %s239, %s240
      %s242 = smul.addr %s241, 4
      %s243 = scalar_lea.vmem %s0, %s242
      %p244 = pneg %p51
      %p245 = pneg %p48
      %s246 = sadd.s32 %s21, 1
      %s247 = smul.u32 2, %s246
      %p248 = scmp.lt.s32.totalorder %s20, 1
      %s249 = scalar_select %p248, %s20, 1
      %p250 = scmp.lt.s32.totalorder %s247, 3
      %s251 = scalar_select %p250, %s247, 3
      %s252 = smul.addr %s249, 4
      %s253 = sadd.s32 %s251, %s252
      %s254 = smul.addr %s253, 4
      %s255 = scalar_lea.vmem %s1, %s254
      %p256 = pneg %p81
      %p257 = pneg %p78
      %p258 = pneg %p102
      %p259 = pneg %p99
      %p260 = pneg %p123
      %p261 = pneg %p120
      %p262 = pneg %p144
      %p263 = pneg %p141
      %p264 = pneg %p172
      %p265 = pneg %p169
      %s266 = smul.u32 2, %s21
      %p267 = scmp.lt.s32.totalorder %s20, 1
      %s268 = scalar_select %p267, %s20, 1
      %p269 = scmp.lt.s32.totalorder %s266, 1
      %s270 = scalar_select %p269, %s266, 1
      %s271 = smul.addr %s268, 2
      %s272 = sadd.s32 %s270, %s271
      %s273 = smul.addr %s272, 4
      %s274 = scalar_lea.vmem %s5, %s273
      %s275 = smul.u32 2, %s21
      %p276 = scmp.lt.s32.totalorder %s20, 1
      %s277 = scalar_select %p276, %s20, 1
      %p278 = scmp.lt.s32.totalorder %s275, 3
      %s279 = scalar_select %p278, %s275, 3
      %s280 = smul.addr %s277, 4
      %s281 = sadd.s32 %s279, %s280
      %s282 = smul.addr %s281, 4
      %s283 = scalar_lea.vmem %s0, %s282
      %s284 = smul.u32 2, %s21
      %s285 = sadd.s32 %s21, 1
      %s286 = smul.u32 2, %s285
      %p287 = scmp.lt.s32.totalorder %s20, 1
      %s288 = scalar_select %p287, %s20, 1
      %p289 = scmp.lt.s32.totalorder %s286, 3
      %s290 = scalar_select %p289, %s286, 3
      %s291 = smul.addr %s288, 4
      %s292 = sadd.s32 %s290, %s291
      %s293 = smul.addr %s292, 4
      %s294 = scalar_lea.vmem %s1, %s293
      %s295 = sadd.s32 %s21, 1
      %s296 = smul.u32 2, %s295
      %s297 = smul.u32 2, %s21
      %p298 = scmp.lt.s32.totalorder %s20, 1
      %s299 = scalar_select %p298, %s20, 1
      %p300 = scmp.lt.s32.totalorder %s297, 1
      %s301 = scalar_select %p300, %s297, 1
      %s302 = smul.addr %s299, 2
      %s303 = sadd.s32 %s301, %s302
      %s304 = smul.addr %s303, 4
      %s305 = scalar_lea.vmem %s5, %s304
      %s306 = smul.u32 2, %s21
      %v308 = vld [vmem:[%s283] sm:$0xf]
      %v309 = vld [vmem:[%s283 + $0x4] sm:$0xf]
      %v310 = vld [vmem:[%s294] sm:$0xf]
      %v311 = vld [vmem:[%s294 + $0x4] sm:$0xf]
      %v314 = vunpack.c.l.b16 %v308
      %v315 = vunpack.c.l.b16 %v309
      %v316 = vpack.c.b16 %v315, %v314
      %v320 = vunpack.c.l.b16 %v310
      %v321 = vunpack.c.l.b16 %v311
      %v322 = vpack.c.b16 %v321, %v320
      %v324 = vld [vmem:[%s2] sm:$0xf]
      %v325 = vld [vmem:[%s2 + $0x4] sm:$0xf]
      %v326 = vld [vmem:[%s2 + $0x8] sm:$0xf]
      %v327 = vld [vmem:[%s2 + $0xc] sm:$0xf]
      %v328 = vld [vmem:[%s2 + $0x10] sm:$0xf]
      %v329 = vld [vmem:[%s2 + $0x14] sm:$0xf]
      %v330 = vld [vmem:[%s2 + $0x18] sm:$0xf]
      %v331 = vld [vmem:[%s2 + $0x1c] sm:$0xf]
      %v332 = vld [vmem:[%s2 + $0x20] sm:$0xf]
      %v333 = vld [vmem:[%s2 + $0x24] sm:$0xf]
      %v334 = vld [vmem:[%s2 + $0x28] sm:$0xf]
      %v335 = vld [vmem:[%s2 + $0x2c] sm:$0xf]
      %v336 = vld [vmem:[%s2 + $0x30] sm:$0xf]
      %v337 = vld [vmem:[%s2 + $0x34] sm:$0xf]
      %v338 = vld [vmem:[%s2 + $0x38] sm:$0xf]
      %v339 = vld [vmem:[%s2 + $0x3c] sm:$0xf]
      %v340 = vunpack.c.l.bf16 %v316
      %v341 = vunpack.c.h.bf16 %v316
      %v342 = vmul.f32 %v340, %v340
      %v343 = vmul.f32 %v341, %v341
      %vm344 = vcmask 523264
      %v345 = vsel %vm344, %v342, 0.0
      %346 = vadd.xlane.f32.xlu0 %v345
      %v347 = vpop.xlane.xlu0 %346
      %v348 = vsel %vm344, %v343, 0.0
      %349 = vadd.xlane.f32.xlu0 %v348
      %v350 = vpop.xlane.xlu0 %349
      %v351 = vadd.f32 %v347, 0.0
      %v352 = vadd.f32 %v350, 0.0
      %vm353 = vsmask.f32 7424
      %v355 = vshrl.u32 %v316, 16
      %v357 = vshll.u32 %v316, 16
      %v359 = vrot.slane %v357, 1
      %v360 = vor.u32 %v355, %v359
      %v362 = vshll.u32 %v322, 16
      %v364 = vrot.slane %v362, 1
      %v365 = vsel %vm353, %v360, %v364
      %v374 = vunpack.c.l.b16 %v332
      %v375 = vunpack.c.l.b16 %v333
      %v376 = vunpack.c.l.b16 %v334
      %v377 = vunpack.c.l.b16 %v335
      %v378 = vunpack.c.l.b16 %v336
      %v379 = vunpack.c.l.b16 %v337
      %v380 = vunpack.c.l.b16 %v338
      %v381 = vunpack.c.l.b16 %v339
      %v382 = vpack.c.b16 %v375, %v374
      %v383 = vpack.c.b16 %v377, %v376
      %v384 = vpack.c.b16 %v379, %v378
      %v385 = vpack.c.b16 %v381, %v380
      %v391 = vsel %vm344, %v365, 0
      %393 = vmatprep.subr.bf16.mxu0 0
      %394 = vmatpush1.bf16.msra.mxu0 0
      %395 = vmatprep.subr.bf16.mxu0 0
      %396 = vmatpush1.bf16.msra.mxu0 0
      %397 = vmatprep.subr.bf16.mxu0 0
      %398 = vmatpush1.bf16.msra.mxu0 0
      %399 = vmatprep.subr.bf16.mxu0 0
      %400 = vmatpush1.bf16.msra.mxu0 0
      %401 = vmatprep.subr.bf16.mxu0 0
      %402 = vmatpush1.bf16.msra.mxu0 %v385
      %403 = vmatprep.subr.bf16.mxu0 0
      %404 = vmatpush1.bf16.msra.mxu0 %v384
      %405 = vmatprep.subr.bf16.mxu0 0
      %406 = vmatpush1.bf16.msra.mxu0 %v383
      %407 = vmatprep.subr.bf16.mxu0 0
      %408 = vmatpush1.bf16.msra.mxu0 %v382
      %409 = vmatprep.subr.bf16.mxu0 0
      %410 = vmatpush2.bf16.msra.mxu0 0
      %411 = vmatprep.subr.bf16.mxu0 0
      %412 = vmatpush2.bf16.msra.mxu0 0
      %413 = vmatprep.subr.bf16.mxu0 0
      %414 = vmatpush2.bf16.msra.mxu0 0
      %415 = vmatprep.subr.bf16.mxu0 0
      %416 = vmatpush2.bf16.msra.mxu0 0
      %417 = vmatprep.subr.bf16.mxu0 0
      %418 = vmatpush2.bf16.msra.mxu0 0
      %419 = vmatprep.subr.bf16.mxu0 0
      %420 = vmatpush2.bf16.msra.mxu0 0
      %421 = vmatprep.subr.bf16.mxu0 0
      %422 = vmatpush2.bf16.msra.mxu0 0
      %423 = vmatprep.subr.bf16.mxu0 0
      %424 = vmatpush2.bf16.msra.mxu0 0
      %425 = vmatprep.mubr.bf16.mxu0 0
      %426 = vmatmul.mubr.bf16.gmra.mxu0 %v391
      %v427 = vpop.f32.mrf.mxu0
      %v428 = vadd.f32 0.0, %v427
      %v429 = vpop.f32.mrf.mxu0
      %v430 = vpop.f32.mrf.mxu0
      %v431 = vadd.f32 0.0, %v430
      %v432 = vpop.f32.mrf.mxu0
      %433 = vdwg.mxu0
      %v442 = vunpack.c.l.b16 %v324
      %v443 = vunpack.c.l.b16 %v325
      %v444 = vunpack.c.l.b16 %v326
      %v445 = vunpack.c.l.b16 %v327
      %v446 = vunpack.c.l.b16 %v328
      %v447 = vunpack.c.l.b16 %v329
      %v448 = vunpack.c.l.b16 %v330
      %v449 = vunpack.c.l.b16 %v331
      %v450 = vpack.c.b16 %v443, %v442
      %v451 = vpack.c.b16 %v445, %v444
      %v452 = vpack.c.b16 %v447, %v446
      %v453 = vpack.c.b16 %v449, %v448
      %v458 = vsel %vm344, %v316, 0
      %460 = vmatprep.subr.bf16.mxu0 0
      %461 = vmatpush1.bf16.msra.mxu0 0
      %462 = vmatprep.subr.bf16.mxu0 0
      %463 = vmatpush1.bf16.msra.mxu0 0
      %464 = vmatprep.subr.bf16.mxu0 0
      %465 = vmatpush1.bf16.msra.mxu0 0
      %466 = vmatprep.subr.bf16.mxu0 0
      %467 = vmatpush1.bf16.msra.mxu0 0
      %468 = vmatprep.subr.bf16.mxu0 0
      %469 = vmatpush1.bf16.msra.mxu0 %v453
      %470 = vmatprep.subr.bf16.mxu0 0
      %471 = vmatpush1.bf16.msra.mxu0 %v452
      %472 = vmatprep.subr.bf16.mxu0 0
      %473 = vmatpush1.bf16.msra.mxu0 %v451
      %474 = vmatprep.subr.bf16.mxu0 0
      %475 = vmatpush1.bf16.msra.mxu0 %v450
      %476 = vmatprep.subr.bf16.mxu0 0
      %477 = vmatpush2.bf16.msra.mxu0 0
      %478 = vmatprep.subr.bf16.mxu0 0
      %479 = vmatpush2.bf16.msra.mxu0 0
      %480 = vmatprep.subr.bf16.mxu0 0
      %481 = vmatpush2.bf16.msra.mxu0 0
      %482 = vmatprep.subr.bf16.mxu0 0
      %483 = vmatpush2.bf16.msra.mxu0 0
      %484 = vmatprep.subr.bf16.mxu0 0
      %485 = vmatpush2.bf16.msra.mxu0 0
      %486 = vmatprep.subr.bf16.mxu0 0
      %487 = vmatpush2.bf16.msra.mxu0 0
      %488 = vmatprep.subr.bf16.mxu0 0
      %489 = vmatpush2.bf16.msra.mxu0 0
      %490 = vmatprep.subr.bf16.mxu0 0
      %491 = vmatpush2.bf16.msra.mxu0 0
      %492 = vmatprep.mubr.bf16.mxu0 0
      %493 = vmatmul.mubr.bf16.gmra.mxu0 %v458
      %v494 = vpop.f32.mrf.mxu0
      %v495 = vadd.f32 %v428, %v494
      %v496 = vpop.f32.mrf.mxu0
      %v497 = vpop.f32.mrf.mxu0
      %v498 = vadd.f32 %v431, %v497
      %v499 = vpop.f32.mrf.mxu0
      %500 = vdwg.mxu0
      %v501 = vunpack.c.l.bf16 %v322
      %v502 = vmul.f32 %v501, %v501
      %vm503 = vcmask 523265
      %v504 = vsel %vm503, %v342, 0.0
      %505 = vadd.xlane.f32.xlu0 %v504
      %v506 = vpop.xlane.xlu0 %505
      %vm507 = vcmask 516096
      %v508 = vsel %vm507, %v502, 0.0
      %509 = vadd.xlane.f32.xlu0 %v508
      %v510 = vpop.xlane.xlu0 %509
      %vm514 = vcmask 1046528
      %v515 = vrot.slane %v506, 1
      %v516 = vrot.slane %v350, 1
      %v517 = vsel %vm514, %v515, %v516
      %v518 = vrot.slane %v510, 1
      %v519 = vsel %vm514, %v516, %v518
      %v522 = vadd.f32 %v351, %v517
      %v523 = vadd.f32 %v352, %v519
      %v524 = vld [vmem:[%s3] sm:$0x1]
      %v526 = vlaneseq
      %v527 = vshrl.u32 %v526, 7
      %v528 = vsub.s32 0, %v527
      %v529 = vrot.slane %v524, %v528
      %v531 = vadd.f32 %v495, %v529
      %v532 = vadd.f32 %v498, %v529
      %v533 = vmul.f32 %v522, 0.0078125
      %v534 = vmul.f32 %v523, 0.0078125
      %v535 = vadd.f32 %v533, 1e-08
      %v536 = vadd.f32 %v534, 1e-08
      %v537 = vrsqrt.pop %v535
      %v538 = vmul.f32 %v535, %v537
      %vm539 = vcmp.eq.f32.partialorder %v535, inf
      %v540 = vsel %vm539, %v535, %v538
      %vm541 = vcmp.eq.f32.partialorder %v535, 0.0
      %v542 = vand.u32 %v535, 2147483648
      %v543 = vsel %vm541, %v542, %v540
      %v544 = vrsqrt.pop %v536
      %v545 = vmul.f32 %v536, %v544
      %vm546 = vcmp.eq.f32.partialorder %v536, inf
      %v547 = vsel %vm546, %v536, %v545
      %vm548 = vcmp.eq.f32.partialorder %v536, 0.0
      %v549 = vand.u32 %v536, 2147483648
      %v550 = vsel %vm548, %v549, %v547
      %v551 = vld [vmem:[%s4] sm:$0x1]
      %553 = vset.pattern.permute.xlu0 0
      %554 = vperm.xlu0 %553, %v543
      %v555 = vpop.permute.xlu0 %554
      %558 = vset.pattern.permute.xlu0 0
      %559 = vperm.xlu0 %558, %v550
      %v560 = vpop.permute.xlu0 %559
      %v563 = vlaneseq
      %v564 = vshrl.u32 %v563, 7
      %v565 = vsub.s32 0, %v564
      %v566 = vrot.slane %v551, %v565
      %v568 = vmul.f32 %v555, %v566
      %v569 = vmul.f32 %v560, %v566
      %v570 = vadd.f32 %v531, %v568
      %v571 = vadd.f32 %v532, %v569
      %v572 = vpack.c.bf16 %v571, %v570
      %v574 = vunpack.c.l.b16 %v572
      %v575 = vunpack.c.h.b16 %v572
      %v576 = vpack.c.b16 %v574, %v574
      %v577 = vpack.c.b16 %v575, %v575
      %580 = vst [vmem:[%s305] sm:$0xf] %v576
      %581 = vst [vmem:[%s305 + $0x4] sm:$0xf] %v577
      %s582 = smul.u32 2, %s21
      %p583 = scmp.lt.s32.totalorder %s20, 1
      %s584 = scalar_select %p583, %s20, 1
      %p585 = scmp.lt.s32.totalorder %s582, 1
      %s586 = scalar_select %p585, %s582, 1
      %s587 = smul.addr %s584, 2
      %s588 = sadd.s32 %s586, %s587
      %s589 = smul.addr %s588, 4
      %s590 = scalar_lea.vmem %s5, %s589
      // Predicated region
      $region41: #{_group_forward.1} parent=39 // pred_check
        %p591 = pneg %p169
      $region42: #{_group_forward.1} parent=39 // pred_check_branch
        %593 = sbr.rel (%p591) target = $region44
      $region43: #{_group_forward.1} parent=39 // pred_region
        %s594 = smul.u32 2, %s21
      $region44: #{_group_forward.1} parent=39 // pred_fallthru
        _
    $region40: #{_group_forward.1} parent=5 // pred_fallthru
      _
    %p595 = scmp.le.s32.totalorder 2, %s11
    // Predicated region
    $region45: #{_group_forward.1} parent=5 // pred_check
      %p596 = pneg %p595
    $region46: #{_group_forward.1} parent=5 // pred_check_branch
      %598 = sbr.rel (%p596) target = $region48
    $region47: #{_group_forward.1} parent=5 // pred_region
      %s599 = ssub.s32 %s11, 2
      // Predicated region
      $region49: #{_group_forward.1} parent=47 // pred_check
        %p600 = pneg %p175
      $region50: #{_group_forward.1} parent=47 // pred_check_branch
        %602 = sbr.rel (%p600) target = $region52
      $region51: #{_group_forward.1} parent=47 // pred_region
        %s603 = smul.u32 2, %s23
        %p604 = scmp.lt.s32.totalorder %s22, 1
        %s605 = scalar_select %p604, %s22, 1
        %p606 = scmp.lt.s32.totalorder %s603, 1
        %s607 = scalar_select %p606, %s603, 1
        %s608 = smul.addr %s605, 2
        %s609 = sadd.s32 %s607, %s608
        %s610 = smul.addr %s609, 4
        %s611 = scalar_lea.vmem %s5, %s610
      $region52: #{_group_forward.1} parent=47 // pred_fallthru
        _
    $region48: #{_group_forward.1} parent=5 // pred_fallthru
      _
  $region6: #{_group_forward.1} parent=0 // loop_footer
    %s15 = sadd.s32 1, %s11
  $region7: #{_group_forward.1} parent=0 // loop_footer_branch
    %10 = sbr.rel target = $region3
  $region8: #{_group_forward.1} parent=0 // loop_exit
    _

</llo_original>
